<compile_context>
chip_gen: v7x
topology: tpu7x:2x2x1
jax: 0.10.0
libtpu: 0.0.40
codegen_flags: <defaults>
</compile_context>

<pallas_src>
import functools

import jax
import jax.numpy as jnp
from jax.experimental import pallas as pl
from jax.experimental.pallas import tpu as pltpu

_LANES = 128


def _round_up(x: int, m: int) -> int:
    return ((x + m - 1) // m) * m


def _vmem_capacity_bytes() -> int:
    """Physical VMEM per TensorCore; conservative fallback if query fails."""
    try:
        info = pltpu.get_tpu_info()
        cap = getattr(info, "vmem_capacity_bytes", None)
        if cap:
            return int(cap)
    except Exception:
        pass
    return 64 << 20  # v7x-sized fallback: safe on every generation.


def _cmd_tile_kernel(x1_ref, x2_ref, o_ref, *, n_moments: int, d_total: int,
                     tile_d: int, needs_mask: bool, use_mxu: bool):
    """Per-D-tile CMD partial rows.

    x1_ref : [N1, TILE_D] block (full batch 1, one feature tile).
    x2_ref : [N2, TILE_D] block (full batch 2, same feature tile).
    o_ref  : [1, M_PAD, TILE_D] block; sublane m (m < n_moments) holds this
             tile's per-feature squared difference for moment m+1.
    """
    if needs_mask:
        # Last tile may extend past D: zero the out-of-range lanes so they
        # contribute exactly 0 to every moment term.
        t = pl.program_id(0)
        rem = d_total - t * tile_d
        lane = jax.lax.broadcasted_iota(jnp.int32, (1, tile_d), 1)
        col_ok = lane < rem
    else:
        col_ok = None

    def moment_rows(x_ref):
        x = x_ref[...].astype(jnp.float32)
        n = x.shape[0]
        if col_ok is not None:
            x = jnp.where(col_ok, x, 0.0)
        inv_n = jnp.float32(1.0 / n)

        if use_mxu:
            # Offload the axis-0 sums to the otherwise-idle MXU (the kernel is
            # VALU-bound on v7x): ones(8, N) @ p -> take row 0, scale by 1/N.
            ones = jnp.ones((8, n), jnp.float32)

            def col_mean(p):
                s = jnp.dot(ones, p, preferred_element_type=jnp.float32)
                return s[0:1, :] * inv_n
        else:
            def col_mean(p):
                return jnp.mean(p, axis=0, keepdims=True)

        m = col_mean(x)                       # [1, TILE_D] mean over batch
        rows = [m]
        sx = x - m
        p = sx
        # Running power product: after i-th iteration p = sx^(i+2); O(M) muls.
        for _ in range(n_moments - 1):
            p = p * sx
            rows.append(col_mean(p))
        return rows

    # Process x1 fully first, then x2: only one [N, TILE_D] working set of
    # f32 temporaries is live at any time (the per-moment rows are tiny).
    rows1 = moment_rows(x1_ref)
    rows2 = moment_rows(x2_ref)

    # Lane-dense per-sublane stores; sqrt + cross-lane/tile sums happen in the
    # wrapper (sqrt is nonlinear across tiles).
    for m_idx in range(n_moments):
        diff = rows1[m_idx] - rows2[m_idx]    # [1, TILE_D]
        o_ref[0, pl.ds(m_idx, 1), :] = diff * diff


def cmd_pallas(x1: jax.Array, x2: jax.Array, n_moments: int,
               *, max_tile_cols: int | None = None) -> jax.Array:
    """CMD(x1, x2, n_moments) -> scalar float32 (matches the PyTorch module)."""
    assert x1.ndim == 2 and x2.ndim == 2 and x1.shape[1] == x2.shape[1]
    assert n_moments >= 1
    n1, d = x1.shape
    n2, _ = x2.shape
    m_pad = max(8, _round_up(n_moments, 8))
    in_itemsize = max(x1.dtype.itemsize, x2.dtype.itemsize)

    # ---- VMEM budget per generation -> tile size -------------------------
    phys = _vmem_capacity_bytes()                       # 64 MiB v7x, 128 MiB v5e/v6e
    vmem_limit = max(32 << 20, min((3 * phys) // 4, 96 << 20))
    budget = vmem_limit // 2                            # per-step working set target
    # Per feature column: 2 double-buffered input blocks + ~3 live f32 temps
    # (x, sx, p) for whichever input is being processed + output block rows.
    bytes_per_col = 2 * in_itemsize * (n1 + n2) + 12 * max(n1, n2) + 8 * m_pad
    d_ceil = _round_up(d, _LANES)
    tile_d = max(_LANES, (budget // bytes_per_col) // _LANES * _LANES)
    tile_d = min(tile_d, d_ceil)
    if max_tile_cols is not None:
        tile_d = min(tile_d, max(_LANES, (max_tile_cols // _LANES) * _LANES))

    # Megacore (v7x): if everything fits in one tile, split into two
    # lane-aligned tiles so the "parallel" grid axis spans both TensorCores.
    if tile_d >= d_ceil and d_ceil >= 2 * _LANES:
        half_lanes = pl.cdiv(d_ceil // _LANES, 2)
        tile_d = half_lanes * _LANES

    num_tiles = pl.cdiv(d, tile_d)
    # Nudge an odd tile count even (better 2-core balance) when cheap.
    if num_tiles > 1 and num_tiles % 2 == 1 and tile_d > _LANES:
        cand = _round_up(pl.cdiv(d, num_tiles + 1), _LANES)
        if _LANES <= cand < tile_d and pl.cdiv(d, cand) % 2 == 0:
            tile_d = cand
            num_tiles = pl.cdiv(d, cand)

    if num_tiles == 1:
        # Single block: use the exact array extent (always a legal block
        # shape) — no partial block, no masking needed.
        tile_d = d
    needs_mask = (d % tile_d) != 0
    use_mxu = (tile_d % _LANES == 0) and min(n1, n2) >= 8

    kernel = functools.partial(
        _cmd_tile_kernel, n_moments=n_moments, d_total=d, tile_d=tile_d,
        needs_mask=needs_mask, use_mxu=use_mxu)

    partial_out = pl.pallas_call(
        kernel,
        out_shape=jax.ShapeDtypeStruct((num_tiles, m_pad, tile_d), jnp.float32),
        grid=(num_tiles,),
        in_specs=[
            pl.BlockSpec((n1, tile_d), lambda t: (0, t)),
            pl.BlockSpec((n2, tile_d), lambda t: (0, t)),
        ],
        out_specs=pl.BlockSpec((1, m_pad, tile_d), lambda t: (t, 0, 0)),
        compiler_params=pltpu.CompilerParams(
            dimension_semantics=("parallel",),
            vmem_limit_bytes=int(vmem_limit)),
    )(x1, x2)

    # Finish in the wrapper: per-moment sum over (tiles, lanes) -> sqrt -> sum.
    sums = jnp.sum(partial_out[:, :n_moments, :], axis=(0, 2))
    return jnp.sum(jnp.sqrt(sums))


def cmd_reference(x1, x2, n_moments):
    """Pure-JAX reference mirroring the PyTorch module exactly."""
    x1 = x1.astype(jnp.float32)
    x2 = x2.astype(jnp.float32)
    mx1 = jnp.mean(x1, axis=0)
    mx2 = jnp.mean(x2, axis=0)
    sx1 = x1 - mx1
    sx2 = x2 - mx2

    def matchnorm(a, b):
        return jnp.sum((a - b) ** 2) ** 0.5

    scms = matchnorm(mx1, mx2)
    for i in range(n_moments - 1):
        k = i + 2
        ss1 = jnp.mean(sx1 ** k, axis=0)
        ss2 = jnp.mean(sx2 ** k, axis=0)
        scms = scms + matchnorm(ss1, ss2)
    return scms


if __name__ == "__main__":
    key = jax.random.PRNGKey(0)
    k1, k2, k3, k4 = jax.random.split(key, 4)
    n_moments = 5

    # Small shape implied by the module's forward: x1, x2 are [batch, features].
    x1 = jax.random.uniform(k1, (8, 32), dtype=jnp.float32)
    x2 = jax.random.uniform(k2, (8, 32), dtype=jnp.float32)
    out = jax.block_until_ready(cmd_pallas(x1, x2, n_moments))
    ref = jax.block_until_ready(cmd_reference(x1, x2, n_moments))
    assert jnp.allclose(out, ref, rtol=1e-5, atol=1e-5), (out, ref)

    # Second check exercises the multi-tile path: partial last tile with
    # in-kernel lane masking, MXU column means, and different batch sizes.
    y1 = jax.random.uniform(k3, (16, 1000), dtype=jnp.float32)
    y2 = jax.random.uniform(k4, (24, 1000), dtype=jnp.float32)
    out2 = jax.block_until_ready(cmd_pallas(y1, y2, n_moments, max_tile_cols=512))
    ref2 = jax.block_until_ready(cmd_reference(y1, y2, n_moments))
    assert jnp.allclose(out2, ref2, rtol=1e-4, atol=1e-5), (out2, ref2)

    print("KERNEL_OK")
</pallas_src>

<mosaic_0001>
module attributes {stable_mosaic.version = 11 : i64} {
  func.func @_cmd_tile_kernel(%arg0: i32, %arg1: memref<8x32xf32, #tpu.memory_space<vmem>>, %arg2: memref<8x32xf32, #tpu.memory_space<vmem>>, %arg3: memref<1x8x32xf32, #tpu.memory_space<vmem>>) attributes {dimension_semantics = [#tpu.dimension_semantics<parallel>], iteration_bounds = array<i64: 1>, scalar_prefetch = 0 : i64, scratch_operands = 0 : i64, tpu.core_type = #tpu.core_type<tc>, window_params = [{transform_indices = @transform_0, window_bounds = array<i64: 8, 32>}, {transform_indices = @transform_1, window_bounds = array<i64: 8, 32>}, {transform_indices = @transform_2, window_bounds = array<i64: 1, 8, 32>}]} {
    %c0 = arith.constant 0 : index
    %c0_0 = arith.constant 0 : index
    %0 = vector.load %arg1[%c0, %c0_0] : memref<8x32xf32, #tpu.memory_space<vmem>>, vector<8x32xf32>
    %cst = arith.constant dense<0.000000e+00> : vector<32xf32>
    %1 = vector.multi_reduction <add>, %0, %cst [0] : vector<8x32xf32> to vector<32xf32>
    %2 = vector.shape_cast %1 : vector<32xf32> to vector<1x32xf32>
    %cst_1 = arith.constant 8.000000e+00 : f32
    %3 = vector.broadcast %cst_1 : f32 to vector<1x32xf32>
    %4 = arith.divf %2, %3 : vector<1x32xf32>
    %5 = vector.broadcast %4 : vector<1x32xf32> to vector<8x32xf32>
    %6 = arith.subf %0, %5 : vector<8x32xf32>
    %7 = arith.mulf %6, %6 : vector<8x32xf32>
    %cst_2 = arith.constant dense<0.000000e+00> : vector<32xf32>
    %8 = vector.multi_reduction <add>, %7, %cst_2 [0] : vector<8x32xf32> to vector<32xf32>
    %9 = vector.shape_cast %8 : vector<32xf32> to vector<1x32xf32>
    %cst_3 = arith.constant 8.000000e+00 : f32
    %10 = vector.broadcast %cst_3 : f32 to vector<1x32xf32>
    %11 = arith.divf %9, %10 : vector<1x32xf32>
    %12 = arith.mulf %7, %6 : vector<8x32xf32>
    %cst_4 = arith.constant dense<0.000000e+00> : vector<32xf32>
    %13 = vector.multi_reduction <add>, %12, %cst_4 [0] : vector<8x32xf32> to vector<32xf32>
    %14 = vector.shape_cast %13 : vector<32xf32> to vector<1x32xf32>
    %cst_5 = arith.constant 8.000000e+00 : f32
    %15 = vector.broadcast %cst_5 : f32 to vector<1x32xf32>
    %16 = arith.divf %14, %15 : vector<1x32xf32>
    %17 = arith.mulf %12, %6 : vector<8x32xf32>
    %cst_6 = arith.constant dense<0.000000e+00> : vector<32xf32>
    %18 = vector.multi_reduction <add>, %17, %cst_6 [0] : vector<8x32xf32> to vector<32xf32>
    %19 = vector.shape_cast %18 : vector<32xf32> to vector<1x32xf32>
    %cst_7 = arith.constant 8.000000e+00 : f32
    %20 = vector.broadcast %cst_7 : f32 to vector<1x32xf32>
    %21 = arith.divf %19, %20 : vector<1x32xf32>
    %22 = arith.mulf %17, %6 : vector<8x32xf32>
    %cst_8 = arith.constant dense<0.000000e+00> : vector<32xf32>
    %23 = vector.multi_reduction <add>, %22, %cst_8 [0] : vector<8x32xf32> to vector<32xf32>
    %24 = vector.shape_cast %23 : vector<32xf32> to vector<1x32xf32>
    %cst_9 = arith.constant 8.000000e+00 : f32
    %25 = vector.broadcast %cst_9 : f32 to vector<1x32xf32>
    %26 = arith.divf %24, %25 : vector<1x32xf32>
    %c0_10 = arith.constant 0 : index
    %c0_11 = arith.constant 0 : index
    %27 = vector.load %arg2[%c0_10, %c0_11] : memref<8x32xf32, #tpu.memory_space<vmem>>, vector<8x32xf32>
    %cst_12 = arith.constant dense<0.000000e+00> : vector<32xf32>
    %28 = vector.multi_reduction <add>, %27, %cst_12 [0] : vector<8x32xf32> to vector<32xf32>
    %29 = vector.shape_cast %28 : vector<32xf32> to vector<1x32xf32>
    %cst_13 = arith.constant 8.000000e+00 : f32
    %30 = vector.broadcast %cst_13 : f32 to vector<1x32xf32>
    %31 = arith.divf %29, %30 : vector<1x32xf32>
    %32 = vector.broadcast %31 : vector<1x32xf32> to vector<8x32xf32>
    %33 = arith.subf %27, %32 : vector<8x32xf32>
    %34 = arith.mulf %33, %33 : vector<8x32xf32>
    %cst_14 = arith.constant dense<0.000000e+00> : vector<32xf32>
    %35 = vector.multi_reduction <add>, %34, %cst_14 [0] : vector<8x32xf32> to vector<32xf32>
    %36 = vector.shape_cast %35 : vector<32xf32> to vector<1x32xf32>
    %cst_15 = arith.constant 8.000000e+00 : f32
    %37 = vector.broadcast %cst_15 : f32 to vector<1x32xf32>
    %38 = arith.divf %36, %37 : vector<1x32xf32>
    %39 = arith.mulf %34, %33 : vector<8x32xf32>
    %cst_16 = arith.constant dense<0.000000e+00> : vector<32xf32>
    %40 = vector.multi_reduction <add>, %39, %cst_16 [0] : vector<8x32xf32> to vector<32xf32>
    %41 = vector.shape_cast %40 : vector<32xf32> to vector<1x32xf32>
    %cst_17 = arith.constant 8.000000e+00 : f32
    %42 = vector.broadcast %cst_17 : f32 to vector<1x32xf32>
    %43 = arith.divf %41, %42 : vector<1x32xf32>
    %44 = arith.mulf %39, %33 : vector<8x32xf32>
    %cst_18 = arith.constant dense<0.000000e+00> : vector<32xf32>
    %45 = vector.multi_reduction <add>, %44, %cst_18 [0] : vector<8x32xf32> to vector<32xf32>
    %46 = vector.shape_cast %45 : vector<32xf32> to vector<1x32xf32>
    %cst_19 = arith.constant 8.000000e+00 : f32
    %47 = vector.broadcast %cst_19 : f32 to vector<1x32xf32>
    %48 = arith.divf %46, %47 : vector<1x32xf32>
    %49 = arith.mulf %44, %33 : vector<8x32xf32>
    %cst_20 = arith.constant dense<0.000000e+00> : vector<32xf32>
    %50 = vector.multi_reduction <add>, %49, %cst_20 [0] : vector<8x32xf32> to vector<32xf32>
    %51 = vector.shape_cast %50 : vector<32xf32> to vector<1x32xf32>
    %cst_21 = arith.constant 8.000000e+00 : f32
    %52 = vector.broadcast %cst_21 : f32 to vector<1x32xf32>
    %53 = arith.divf %51, %52 : vector<1x32xf32>
    %54 = arith.subf %4, %31 : vector<1x32xf32>
    %55 = arith.mulf %54, %54 : vector<1x32xf32>
    %c0_22 = arith.constant 0 : index
    %c0_23 = arith.constant 0 : index
    %c0_24 = arith.constant 0 : index
    %56 = vector.load %arg3[%c0_22, %c0_23, %c0_24] : memref<1x8x32xf32, #tpu.memory_space<vmem>>, vector<1x1x32xf32>
    %57 = vector.shape_cast %56 : vector<1x1x32xf32> to vector<1x32xf32>
    %58 = vector.shape_cast %55 : vector<1x32xf32> to vector<1x1x32xf32>
    tpu.vector_store %arg3[%c0_22, %c0_23, %c0_24], %58 {strides = array<i32>} : memref<1x8x32xf32, #tpu.memory_space<vmem>>, vector<1x1x32xf32>,
    %59 = arith.subf %11, %38 : vector<1x32xf32>
    %60 = arith.mulf %59, %59 : vector<1x32xf32>
    %c0_25 = arith.constant 0 : index
    %c1 = arith.constant 1 : index
    %c0_26 = arith.constant 0 : index
    %61 = vector.load %arg3[%c0_25, %c1, %c0_26] : memref<1x8x32xf32, #tpu.memory_space<vmem>>, vector<1x1x32xf32>
    %62 = vector.shape_cast %61 : vector<1x1x32xf32> to vector<1x32xf32>
    %63 = vector.shape_cast %60 : vector<1x32xf32> to vector<1x1x32xf32>
    tpu.vector_store %arg3[%c0_25, %c1, %c0_26], %63 {strides = array<i32>} : memref<1x8x32xf32, #tpu.memory_space<vmem>>, vector<1x1x32xf32>,
    %64 = arith.subf %16, %43 : vector<1x32xf32>
    %65 = arith.mulf %64, %64 : vector<1x32xf32>
    %c0_27 = arith.constant 0 : index
    %c2 = arith.constant 2 : index
    %c0_28 = arith.constant 0 : index
    %66 = vector.load %arg3[%c0_27, %c2, %c0_28] : memref<1x8x32xf32, #tpu.memory_space<vmem>>, vector<1x1x32xf32>
    %67 = vector.shape_cast %66 : vector<1x1x32xf32> to vector<1x32xf32>
    %68 = vector.shape_cast %65 : vector<1x32xf32> to vector<1x1x32xf32>
    tpu.vector_store %arg3[%c0_27, %c2, %c0_28], %68 {strides = array<i32>} : memref<1x8x32xf32, #tpu.memory_space<vmem>>, vector<1x1x32xf32>,
    %69 = arith.subf %21, %48 : vector<1x32xf32>
    %70 = arith.mulf %69, %69 : vector<1x32xf32>
    %c0_29 = arith.constant 0 : index
    %c3 = arith.constant 3 : index
    %c0_30 = arith.constant 0 : index
    %71 = vector.load %arg3[%c0_29, %c3, %c0_30] : memref<1x8x32xf32, #tpu.memory_space<vmem>>, vector<1x1x32xf32>
    %72 = vector.shape_cast %71 : vector<1x1x32xf32> to vector<1x32xf32>
    %73 = vector.shape_cast %70 : vector<1x32xf32> to vector<1x1x32xf32>
    tpu.vector_store %arg3[%c0_29, %c3, %c0_30], %73 {strides = array<i32>} : memref<1x8x32xf32, #tpu.memory_space<vmem>>, vector<1x1x32xf32>,
    %74 = arith.subf %26, %53 : vector<1x32xf32>
    %75 = arith.mulf %74, %74 : vector<1x32xf32>
    %c0_31 = arith.constant 0 : index
    %c4 = arith.constant 4 : index
    %c0_32 = arith.constant 0 : index
    %76 = vector.load %arg3[%c0_31, %c4, %c0_32] : memref<1x8x32xf32, #tpu.memory_space<vmem>>, vector<1x1x32xf32>
    %77 = vector.shape_cast %76 : vector<1x1x32xf32> to vector<1x32xf32>
    %78 = vector.shape_cast %75 : vector<1x32xf32> to vector<1x1x32xf32>
    tpu.vector_store %arg3[%c0_31, %c4, %c0_32], %78 {strides = array<i32>} : memref<1x8x32xf32, #tpu.memory_space<vmem>>, vector<1x1x32xf32>,
    return
  }
  func.func @transform_0(%arg0: i32) -> (i32, i32) {
    %c0_i32 = arith.constant 0 : i32
    %c0_i32_0 = arith.constant 0 : i32
    return %c0_i32, %arg0 : i32, i32
  }
  func.func @transform_1(%arg0: i32) -> (i32, i32) {
    %c0_i32 = arith.constant 0 : i32
    %c0_i32_0 = arith.constant 0 : i32
    return %c0_i32, %arg0 : i32, i32
  }
  func.func @transform_2(%arg0: i32) -> (i32, i32, i32) {
    %c0_i32 = arith.constant 0 : i32
    %c0_i32_0 = arith.constant 0 : i32
    %c0_i32_1 = arith.constant 0 : i32
    return %arg0, %c0_i32, %c0_i32_0 : i32, i32, i32
  }
}

</mosaic_0001>

<llo_original>
// kernel: tpu_custom_call.1
$region0: #{tpu_custom_call.1}
  #allocation0 [shape = 'u32[]', space=smem, size = 0x4, offset = 0x4, fixed_abs, tag = 'smem constant byte address 0x4 - core index']
  #allocation1 [shape = 'u32[144,128]{1,0:T(1,128)}', space=vmem, size = 0x12000, scoped, tag = 'internal scratch']
  %s0 = inlined_call_operand.hbm [shape: f32[8,32], index: 0, kind: input, shape index: {}]
  %s1 = inlined_call_operand.hbm [shape: f32[8,32], index: 1, kind: input, shape index: {}]
  %s2 = inlined_call_operand.hbm [shape: f32[1,8,32], index: 2, kind: output, shape index: {}]
  %s3 = sld [smem:[#allocation0]]
  $region26: #{tpu_custom_call.1} parent=0
    _
  %s5 = ssub.s32 1, %s3
  %s6 = scalar_select 0, %s5, %s3
  $region1: #{tpu_custom_call.1} parent=0
    #allocation2 [shape = 'u8[4096]{0}', space=vmem, size = 0x1000, scoped, tag = 'input window, operand 0, single buffered']
    #allocation3 [shape = 's32[1]{0}', space=sflag, size = 0x4, scoped, tag = 'scoped memory for tpu_custom_call.1']
    #allocation4 [shape = 's32[1]{0}', space=sflag, size = 0x4, scoped, tag = 'scoped memory for tpu_custom_call.1']
    #allocation5 [shape = 'u8[4096]{0}', space=vmem, size = 0x1000, scoped, tag = 'input window, operand 1, single buffered']
    #allocation6 [shape = 's32[1]{0}', space=sflag, size = 0x4, scoped, tag = 'scoped memory for tpu_custom_call.1']
    #allocation7 [shape = 'u8[4096]{0}', space=vmem, size = 0x1000, scoped, tag = 'output window, operand 0, single buffered']
    %7 = vsyncpa [#allocation3], 0
    %8 = vsyncpa [#allocation6], 0
    %9 = vsyncpa [#allocation4], 0
    // Predicated region
    $region2: #{tpu_custom_call.1} parent=1 // pred_check
      _
    $region3: #{tpu_custom_call.1} parent=1 // pred_check_branch
      %11 = sbr.rel (0) target = $region5
    $region4: #{tpu_custom_call.1} parent=1 // pred_region
      %s13 = ssub.s32 128, 128
      %14 = vsyncadd [#allocation3], %s13
      %s16 = sshll.u32 [#allocation2], 4
      %s17 = int_to_ptr.vmem [resolvable:$true] %s16
      %19 = dma.hbm_to_vmem [thread:$0]  %s0, 128, %s17, [#allocation3]
    $region5: #{tpu_custom_call.1} parent=1 // pred_fallthru
      _
    // Predicated region
    $region6: #{tpu_custom_call.1} parent=1 // pred_check
      _
    $region7: #{tpu_custom_call.1} parent=1 // pred_check_branch
      %21 = sbr.rel (0) target = $region9
    $region8: #{tpu_custom_call.1} parent=1 // pred_region
      %s23 = ssub.s32 128, 128
      %24 = vsyncadd [#allocation6], %s23
      %s26 = sshll.u32 [#allocation5], 4
      %s27 = int_to_ptr.vmem [resolvable:$true] %s26
      %29 = dma.hbm_to_vmem [thread:$0]  %s1, 128, %s27, [#allocation6]
    $region9: #{tpu_custom_call.1} parent=1 // pred_fallthru
      _
    // Predicated region
    $region10: #{tpu_custom_call.1} parent=1 // pred_check
      _
    $region11: #{tpu_custom_call.1} parent=1 // pred_check_branch
      %31 = sbr.rel (0) target = $region13
    $region12: #{tpu_custom_call.1} parent=1 // pred_region
      %32 = dma.done [#allocation3], 128
    $region13: #{tpu_custom_call.1} parent=1 // pred_fallthru
      _
    // Predicated region
    $region14: #{tpu_custom_call.1} parent=1 // pred_check
      _
    $region15: #{tpu_custom_call.1} parent=1 // pred_check_branch
      %34 = sbr.rel (0) target = $region17
    $region16: #{tpu_custom_call.1} parent=1 // pred_region
      %35 = dma.done [#allocation6], 128
    $region17: #{tpu_custom_call.1} parent=1 // pred_fallthru
      _
    %v36 = vld [vmem:[#allocation2] sm:$0xff]
    %vm37 = vcmask 261120
    %v38 = vsel %vm37, %v36, 0.0
    %v39 = vrot.slane %v38, 4
    %v40 = vadd.f32 %v38, %v39
    %v41 = vrot.slane %v40, 2
    %v42 = vadd.f32 %v40, %v41
    %v43 = vrot.slane %v42, 1
    %v44 = vadd.f32 %v42, %v43
    %v45 = vrcp.pop 8.0
    %v46 = vmul.f32 %v44, %v45
    %v47 = vsub.f32 %v36, %v46
    %v48 = vmul.f32 %v47, %v47
    %v49 = vsel %vm37, %v48, 0.0
    %v50 = vrot.slane %v49, 4
    %v51 = vadd.f32 %v49, %v50
    %v52 = vrot.slane %v51, 2
    %v53 = vadd.f32 %v51, %v52
    %v54 = vrot.slane %v53, 1
    %v55 = vadd.f32 %v53, %v54
    %v56 = vmul.f32 %v55, %v45
    %v57 = vmul.f32 %v48, %v47
    %v58 = vsel %vm37, %v57, 0.0
    %v59 = vrot.slane %v58, 4
    %v60 = vadd.f32 %v58, %v59
    %v61 = vrot.slane %v60, 2
    %v62 = vadd.f32 %v60, %v61
    %v63 = vrot.slane %v62, 1
    %v64 = vadd.f32 %v62, %v63
    %v65 = vmul.f32 %v64, %v45
    %v66 = vmul.f32 %v57, %v47
    %v67 = vsel %vm37, %v66, 0.0
    %v68 = vrot.slane %v67, 4
    %v69 = vadd.f32 %v67, %v68
    %v70 = vrot.slane %v69, 2
    %v71 = vadd.f32 %v69, %v70
    %v72 = vrot.slane %v71, 1
    %v73 = vadd.f32 %v71, %v72
    %v74 = vmul.f32 %v73, %v45
    %v75 = vmul.f32 %v66, %v47
    %v76 = vsel %vm37, %v75, 0.0
    %v77 = vrot.slane %v76, 4
    %v78 = vadd.f32 %v76, %v77
    %v79 = vrot.slane %v78, 2
    %v80 = vadd.f32 %v78, %v79
    %v81 = vrot.slane %v80, 1
    %v82 = vadd.f32 %v80, %v81
    %v83 = vmul.f32 %v82, %v45
    %v84 = vld [vmem:[#allocation5] sm:$0xff]
    %v85 = vsel %vm37, %v84, 0.0
    %v86 = vrot.slane %v85, 4
    %v87 = vadd.f32 %v85, %v86
    %v88 = vrot.slane %v87, 2
    %v89 = vadd.f32 %v87, %v88
    %v90 = vrot.slane %v89, 1
    %v91 = vadd.f32 %v89, %v90
    %v92 = vmul.f32 %v91, %v45
    %v93 = vsub.f32 %v84, %v92
    %v94 = vmul.f32 %v93, %v93
    %v95 = vsel %vm37, %v94, 0.0
    %v96 = vrot.slane %v95, 4
    %v97 = vadd.f32 %v95, %v96
    %v98 = vrot.slane %v97, 2
    %v99 = vadd.f32 %v97, %v98
    %v100 = vrot.slane %v99, 1
    %v101 = vadd.f32 %v99, %v100
    %v102 = vmul.f32 %v101, %v45
    %v103 = vmul.f32 %v94, %v93
    %v104 = vsel %vm37, %v103, 0.0
    %v105 = vrot.slane %v104, 4
    %v106 = vadd.f32 %v104, %v105
    %v107 = vrot.slane %v106, 2
    %v108 = vadd.f32 %v106, %v107
    %v109 = vrot.slane %v108, 1
    %v110 = vadd.f32 %v108, %v109
    %v111 = vmul.f32 %v110, %v45
    %v112 = vmul.f32 %v103, %v93
    %v113 = vsel %vm37, %v112, 0.0
    %v114 = vrot.slane %v113, 4
    %v115 = vadd.f32 %v113, %v114
    %v116 = vrot.slane %v115, 2
    %v117 = vadd.f32 %v115, %v116
    %v118 = vrot.slane %v117, 1
    %v119 = vadd.f32 %v117, %v118
    %v120 = vmul.f32 %v119, %v45
    %v121 = vmul.f32 %v112, %v93
    %v122 = vsel %vm37, %v121, 0.0
    %v123 = vrot.slane %v122, 4
    %v124 = vadd.f32 %v122, %v123
    %v125 = vrot.slane %v124, 2
    %v126 = vadd.f32 %v124, %v125
    %v127 = vrot.slane %v126, 1
    %v128 = vadd.f32 %v126, %v127
    %v129 = vmul.f32 %v128, %v45
    %v130 = vsub.f32 %v46, %v92
    %v131 = vmul.f32 %v130, %v130
    %vm132 = vcmask 253952
    %133 = vst.msk [vmem:[#allocation7] sm:$0x1] %vm132, %v131
    %v134 = vsub.f32 %v56, %v102
    %v135 = vmul.f32 %v134, %v134
    %136 = vst.msk [vmem:[#allocation7 + $0x1] sm:$0x1] %vm132, %v135
    %v137 = vsub.f32 %v65, %v111
    %v138 = vmul.f32 %v137, %v137
    %139 = vst.msk [vmem:[#allocation7 + $0x2] sm:$0x1] %vm132, %v138
    %v140 = vsub.f32 %v74, %v120
    %v141 = vmul.f32 %v140, %v140
    %142 = vst.msk [vmem:[#allocation7 + $0x3] sm:$0x1] %vm132, %v141
    %v143 = vsub.f32 %v83, %v129
    %v144 = vmul.f32 %v143, %v143
    %145 = vst.msk [vmem:[#allocation7 + $0x4] sm:$0x1] %vm132, %v144
    // Predicated region
    $region18: #{tpu_custom_call.1} parent=1 // pred_check
      _
    $region19: #{tpu_custom_call.1} parent=1 // pred_check_branch
      %147 = sbr.rel (0) target = $region21
    $region20: #{tpu_custom_call.1} parent=1 // pred_region
      %s149 = ssub.s32 128, 128
      %150 = vsyncadd [#allocation4], %s149
      %s152 = sshll.u32 [#allocation7], 4
      %s153 = int_to_ptr.vmem [resolvable:$true] %s152
      %155 = dma.vmem_to_hbm [thread:$0]  %s153, 128, %s2, [#allocation4]
    $region21: #{tpu_custom_call.1} parent=1 // pred_fallthru
      _
    // Predicated region
    $region22: #{tpu_custom_call.1} parent=1 // pred_check
      _
    $region23: #{tpu_custom_call.1} parent=1 // pred_check_branch
      %157 = sbr.rel (0) target = $region25
    $region24: #{tpu_custom_call.1} parent=1 // pred_region
      %158 = dma.done [#allocation4], 128
    $region25: #{tpu_custom_call.1} parent=1 // pred_fallthru
      _
    %159 = vsyncpa [#allocation3], 1
    %160 = vsyncpa [#allocation6], 1
    %161 = vsyncpa [#allocation4], 1

</llo_original>
